<compile_context>
chip_gen: v6e
topology: v6e:2x2x1
jax: 0.10.0
libtpu: 0.0.40
codegen_flags: <defaults>
</compile_context>

<pallas_src>
import jax
import jax.numpy as jnp
from jax.experimental import pallas as pl
from jax.experimental.pallas import tpu as pltpu


def _cdiv(a, b):
    return (a + b - 1) // b


def _round_up(a, b):
    return _cdiv(a, b) * b


def _sigmoid_mul_kernel(x_ref, g_ref, o_ref):
    # g_ref: (tile_nc, 1). Sigmoid in f32 (cheap, EUP), cast to feature dtype,
    # then broadcast-multiply along lanes against the (tile_nc, HW) tile.
    gate = jax.nn.sigmoid(g_ref[...].astype(jnp.float32)).astype(x_ref.dtype)
    o_ref[...] = x_ref[...] * gate


def _make_resident_gate_kernel(tile_nc):
    # Gate column stays resident in VMEM (one DMA for the whole grid); each
    # grid step slices its row window out of the full column.
    def kernel(x_ref, g_ref, o_ref):
        start = pl.multiple_of(pl.program_id(0) * tile_nc, tile_nc)
        g = g_ref[pl.ds(start, tile_nc), :]
        gate = jax.nn.sigmoid(g.astype(jnp.float32)).astype(x_ref.dtype)
        o_ref[...] = x_ref[...] * gate
    return kernel


def _device_tuning():
    """Return (per-tile VMEM budget bytes, min grid steps, vmem_limit_bytes)."""
    try:
        vmem_cap = int(getattr(pltpu.get_tpu_info(), "vmem_capacity_bytes", 0))
    except Exception:  # pragma: no cover - be robust if the query is unavailable
        vmem_cap = 0
    mib = 1024 * 1024
    if vmem_cap and vmem_cap <= 64 * mib:
        # v7x-class: half the VMEM, 2 TensorCores -> >=2 steps per TC.
        return 4 * mib, 4, 32 * mib
    if vmem_cap:
        # v5e / v6e: 128 MiB VMEM, single TC -> big tiles, allow grid=(1,).
        return 8 * mib, 1, 64 * mib
    # Unknown part: conservative defaults that fit every generation.
    return 3 * mib, 2, 32 * mib


def _pick_tile_rows(nc, hw, itemsize, *, align, min_tiles, vmem_budget_bytes):
    """Largest `align`-multiple row tile of the (nc, hw) view such that the
    pipeline footprint (2 input + 2 output buffers of the tile) stays under
    vmem_budget_bytes, with >= min_tiles grid steps when nc allows a split."""
    hw_pad = _round_up(hw, 128)          # lane padding of the tile in VMEM
    bytes_per_row = hw_pad * itemsize
    cap = vmem_budget_bytes // (4 * bytes_per_row)   # 2 in + 2 out buffers
    cap = max(align, (cap // align) * align)
    if min_tiles > 1:
        per_tile = max(align, _round_up(_cdiv(nc, min_tiles), align))
        cap = min(cap, per_tile)
    # tile == nc -> single full-dim block (always a legal block shape).
    return min(cap, nc)


def sigmoid_mul(x180, x184):
    """x180: [N, C, H, W], x184: [N, C, 1, 1] -> x180 * sigmoid(x184)."""
    N, C, H, W = x180.shape
    assert x184.shape == (N, C, 1, 1)
    NC, HW = N * C, H * W

    x2d = x180.reshape(NC, HW)
    g2d = x184.reshape(NC, 1)

    x_itemsize = jnp.dtype(x180.dtype).itemsize
    # Sublane alignment of the row tile: 8 for f32, 16 for bf16, 32 for int8/fp8.
    align = max(8, 32 // x_itemsize)

    budget, min_tiles, vmem_limit = _device_tuning()
    tile_nc = _pick_tile_rows(NC, HW, x_itemsize, align=align,
                              min_tiles=min_tiles, vmem_budget_bytes=budget)
    num_tiles = _cdiv(NC, tile_nc)

    # Keep the gate column resident in VMEM when the grid has several steps
    # and its lane-padded footprint is tiny; otherwise tile it per step.
    g_itemsize = jnp.dtype(x184.dtype).itemsize
    padded_rows = num_tiles * tile_nc
    gate_resident = (num_tiles > 1
                     and padded_rows * 128 * g_itemsize <= 2 * 1024 * 1024)

    if gate_resident:
        if padded_rows != NC:
            g2d = jnp.pad(g2d, ((0, padded_rows - NC), (0, 0)))
        kernel = _make_resident_gate_kernel(tile_nc)
        gate_spec = pl.BlockSpec((padded_rows, 1), lambda i: (0, 0))
    else:
        kernel = _sigmoid_mul_kernel
        gate_spec = pl.BlockSpec((tile_nc, 1), lambda i: (i, 0))

    out = pl.pallas_call(
        kernel,
        out_shape=jax.ShapeDtypeStruct((NC, HW), x180.dtype),
        grid_spec=pl.GridSpec(
            grid=(num_tiles,),
            in_specs=[
                # Feature-map tile: (tile_nc, HW); lane dim is the full HW.
                pl.BlockSpec((tile_nc, HW), lambda i: (i, 0)),
                gate_spec,
            ],
            out_specs=pl.BlockSpec((tile_nc, HW), lambda i: (i, 0)),
        ),
        compiler_params=pltpu.CompilerParams(
            # Row tiles are independent -> shard across TCs on megacore parts.
            dimension_semantics=("parallel",),
            vmem_limit_bytes=vmem_limit,
        ),
    )(x2d, g2d)

    return out.reshape(N, C, H, W)


if __name__ == "__main__":
    key = jax.random.PRNGKey(0)
    k1, k2 = jax.random.split(key)

    # Shapes from the original module: feature map + per-channel SE gate.
    N, C, H, W = 1, 432, 28, 28
    x180 = jax.random.normal(k1, (N, C, H, W), dtype=jnp.float32)
    x184 = jax.random.normal(k2, (N, C, 1, 1), dtype=jnp.float32)

    # Reference (plain JAX).
    ref = x180 * jax.nn.sigmoid(x184)

    out = sigmoid_mul(x180, x184)
    jax.block_until_ready(out)

    assert out.shape == (N, C, H, W)
    assert jnp.allclose(out, ref, atol=1e-6, rtol=1e-6)

    print("KERNEL_OK")
</pallas_src>

<mosaic_0001>
module attributes {stable_mosaic.version = 11 : i64} {
  func.func @kernel(%arg0: i32, %arg1: memref<216x784xf32, #tpu.memory_space<vmem>>, %arg2: memref<432x1xf32, #tpu.memory_space<vmem>>, %arg3: memref<216x784xf32, #tpu.memory_space<vmem>>) attributes {dimension_semantics = [#tpu.dimension_semantics<parallel>], iteration_bounds = array<i64: 2>, scalar_prefetch = 0 : i64, scratch_operands = 0 : i64, tpu.core_type = #tpu.core_type<tc>, window_params = [{transform_indices = @transform_0, window_bounds = array<i64: 216, 784>}, {pipeline_mode = #tpu.pipeline_mode<synchronous>, transform_indices = @transform_1, window_bounds = array<i64: 432, 1>}, {transform_indices = @transform_2, window_bounds = array<i64: 216, 784>}]} {
    %c216_i32 = arith.constant 216 : i32
    %0 = arith.muli %arg0, %c216_i32 : i32
    %1 = tpu.assume_multiple %0, 216 : i32
    %2 = arith.index_cast %1 : i32 to index
    %c0 = arith.constant 0 : index
    %3 = vector.load %arg2[%2, %c0] : memref<432x1xf32, #tpu.memory_space<vmem>>, vector<216x1xf32>
    %4 = arith.negf %3 : vector<216x1xf32>
    %5 = math.exp %4 : vector<216x1xf32>
    %cst = arith.constant 1.000000e+00 : f32
    %6 = vector.broadcast %cst : f32 to vector<216x1xf32>
    %7 = arith.addf %6, %5 : vector<216x1xf32>
    %8 = arith.divf %6, %7 : vector<216x1xf32>
    %c0_0 = arith.constant 0 : index
    %c0_1 = arith.constant 0 : index
    %9 = vector.load %arg1[%c0_0, %c0_1] : memref<216x784xf32, #tpu.memory_space<vmem>>, vector<216x784xf32>
    %10 = vector.broadcast %8 : vector<216x1xf32> to vector<216x784xf32>
    %11 = arith.mulf %9, %10 : vector<216x784xf32>
    %c0_2 = arith.constant 0 : index
    %c0_3 = arith.constant 0 : index
    %12 = vector.load %arg3[%c0_2, %c0_3] : memref<216x784xf32, #tpu.memory_space<vmem>>, vector<216x784xf32>
    tpu.vector_store %arg3[%c0_2, %c0_3], %11 {strides = array<i32>} : memref<216x784xf32, #tpu.memory_space<vmem>>, vector<216x784xf32>,
    return
  }
  func.func @transform_0(%arg0: i32) -> (i32, i32) {
    %c0_i32 = arith.constant 0 : i32
    %c0_i32_0 = arith.constant 0 : i32
    return %arg0, %c0_i32 : i32, i32
  }
  func.func @transform_1(%arg0: i32) -> (i32, i32) {
    %c0_i32 = arith.constant 0 : i32
    %c0_i32_0 = arith.constant 0 : i32
    %c0_i32_1 = arith.constant 0 : i32
    return %c0_i32, %c0_i32_0 : i32, i32
  }
  func.func @transform_2(%arg0: i32) -> (i32, i32) {
    %c0_i32 = arith.constant 0 : i32
    %c0_i32_0 = arith.constant 0 : i32
    return %arg0, %c0_i32 : i32, i32
  }
}

</mosaic_0001>

<llo_original>
// kernel: tpu_custom_call.1
$region0: #{tpu_custom_call.1}
  #allocation0 [shape = 'u32[]', space=smem, size = 0x4, offset = 0x4, fixed_abs, tag = 'smem constant byte address 0x4 - core index']
  #allocation1 [shape = 'u32[144,128]{1,0:T(1,128)}', space=vmem, size = 0x12000, scoped, tag = 'internal scratch']
  %s0 = inlined_call_operand.hbm [shape: f32[432,784], index: 0, kind: input, shape index: {}]
  %s1 = inlined_call_operand.vmem [shape: f32[432,1], index: 1, kind: input, shape index: {}]
  %s2 = inlined_call_operand.hbm [shape: f32[432,784], index: 2, kind: output, shape index: {}]
  %s3 = sld [smem:[#allocation0]]
  $region45: #{tpu_custom_call.1} parent=0
    _
  %s5 = ssub.s32 1, %s3
  %s6 = scalar_select 0, %s5, %s3
  $region1: #{tpu_custom_call.1} parent=0
    #allocation2 [shape = 'u8[1548288]{0}', space=vmem, size = 0x17a000, scoped, tag = 'input window, operand 0']
    #allocation3 [shape = 's32[2]{0}', space=sflag, size = 0x8, scoped, tag = 'scoped memory for tpu_custom_call.1']
    #allocation4 [shape = 's32[2]{0}', space=sflag, size = 0x8, scoped, tag = 'scoped memory for tpu_custom_call.1']
    #allocation5 [shape = 'u8[1548288]{0}', space=vmem, size = 0x17a000, scoped, tag = 'output window, operand 0']
    %7 = vsyncpa [#allocation3], 0
    %s8 = scalar_lea.sflag [#allocation3], 1
    %9 = vsyncpa %s8, 0
    %10 = vsyncpa [#allocation4], 0
    %s11 = scalar_lea.sflag [#allocation4], 1
    %12 = vsyncpa %s11, 0
    loop: start=0, step=1, limit=4
    $region2: #{tpu_custom_call.1} parent=1 // loop_pre_header
      _
    $region3: #{tpu_custom_call.1} parent=1 // loop_header
      %s14 = sphi 0, %s18
      %p15 = scmp.ge.s32.totalorder %s14, 4
      %s24 = sphi 0, %s26
      %s27 = sphi 0, %s24
      %s28 = sphi 0, %s27
      %s44 = sphi 0, %s28
      %s48 = sphi 0, %s48
      %s50 = sphi 0, %s48
      %s51 = sphi 0, %s50
      %s65 = sphi 0, %s51
      %s71 = sphi 0, %s73
      %s74 = sphi 0, %s71
      %s75 = sphi 0, %s74
      %s91 = sphi 0, %s75
    $region4: #{tpu_custom_call.1} parent=1 // loop_header_branch
      %17 = sbr.rel (%p15) target = $region8
    $region5: #{tpu_custom_call.1} parent=1 // loop_body
      %s19 = ssub.s32 %s14, 1
      %s20 = ssub.s32 %s14, 2
      %s21 = sadd.s32 %s14, 1
      %s22 = ssub.s32 %s14, %s21
      %p23 = scmp.eq.s32.totalorder %s22, 0
      %s25 = sadd.s32 %s24, 1
      %s26 = scalar_select %p23, %s24, %s25
      %p29 = pneg %p23
      %p30 = scmp.eq.s32.totalorder %s14, 1
      %p31 = por %p29, %p30
      %p32 = scmp.ne.s32.totalorder %s24, %s27
      %p33 = scmp.eq.s32.totalorder %s14, 0
      %p34 = por %p32, %p33
      %p35 = scmp.ne.s32.totalorder %s24, %s27
      %p36 = scmp.eq.s32.totalorder %s19, 1
      %p37 = por %p35, %p36
      %p38 = scmp.ne.s32.totalorder %s27, %s28
      %p39 = scmp.eq.s32.totalorder %s19, 0
      %p40 = por %p38, %p39
      %p41 = scmp.ne.s32.totalorder %s27, %s28
      %p42 = scmp.eq.s32.totalorder %s20, 1
      %p43 = por %p41, %p42
      %p45 = scmp.ne.s32.totalorder %s28, %s44
      %p46 = scmp.eq.s32.totalorder %s20, 0
      %p47 = por %p45, %p46
      %s49 = sadd.s32 %s48, 1
      %p52 = scmp.eq.s32.totalorder %s14, 1
      %p53 = scmp.ne.s32.totalorder %s48, %s50
      %p54 = scmp.eq.s32.totalorder %s14, 0
      %p55 = por %p53, %p54
      %p56 = scmp.ne.s32.totalorder %s48, %s50
      %p57 = scmp.eq.s32.totalorder %s19, 1
      %p58 = por %p56, %p57
      %p59 = scmp.ne.s32.totalorder %s50, %s51
      %p60 = scmp.eq.s32.totalorder %s19, 0
      %p61 = por %p59, %p60
      %p62 = scmp.ne.s32.totalorder %s50, %s51
      %p63 = scmp.eq.s32.totalorder %s20, 1
      %p64 = por %p62, %p63
      %p66 = scmp.ne.s32.totalorder %s51, %s65
      %p67 = scmp.eq.s32.totalorder %s20, 0
      %p68 = por %p66, %p67
      %s69 = ssub.s32 %s14, %s21
      %p70 = scmp.eq.s32.totalorder %s69, 0
      %s72 = sadd.s32 %s71, 1
      %s73 = scalar_select %p70, %s71, %s72
      %p76 = pneg %p70
      %p77 = scmp.eq.s32.totalorder %s14, 1
      %p78 = por %p76, %p77
      %p79 = scmp.ne.s32.totalorder %s71, %s74
      %p80 = scmp.eq.s32.totalorder %s14, 0
      %p81 = por %p79, %p80
      %p82 = scmp.ne.s32.totalorder %s71, %s74
      %p83 = scmp.eq.s32.totalorder %s19, 1
      %p84 = por %p82, %p83
      %p85 = scmp.ne.s32.totalorder %s74, %s75
      %p86 = scmp.eq.s32.totalorder %s19, 0
      %p87 = por %p85, %p86
      %p88 = scmp.ne.s32.totalorder %s74, %s75
      %p89 = scmp.eq.s32.totalorder %s20, 1
      %p90 = por %p88, %p89
      %p92 = scmp.ne.s32.totalorder %s75, %s91
      %p93 = scmp.eq.s32.totalorder %s20, 0
      %p94 = por %p92, %p93
      %p95 = scmp.le.s32.totalorder 1, %s14
      %p96 = scmp.lt.s32.totalorder %s14, 3
      %p97 = pnand %p95, %p96
      %p98 = pneg %p97
      // Predicated region
      $region9: #{tpu_custom_call.1} parent=5 // pred_check
        _
      $region10: #{tpu_custom_call.1} parent=5 // pred_check_branch
        %100 = sbr.rel (%p97) target = $region12
      $region11: #{tpu_custom_call.1} parent=5 // pred_region
        %s101 = ssub.s32 %s14, 1
        // Predicated region
        $region13: #{tpu_custom_call.1} parent=11 // pred_check
          %p102 = pneg %p61
        $region14: #{tpu_custom_call.1} parent=11 // pred_check_branch
          %104 = sbr.rel (%p102) target = $region16
        $region15: #{tpu_custom_call.1} parent=11 // pred_region
          _
        $region16: #{tpu_custom_call.1} parent=11 // pred_fallthru
          _
      $region12: #{tpu_custom_call.1} parent=5 // pred_fallthru
        _
      %p105 = scmp.lt.s32.totalorder %s14, 2
      // Predicated region
      $region17: #{tpu_custom_call.1} parent=5 // pred_check
        %p106 = pneg %p105
      $region18: #{tpu_custom_call.1} parent=5 // pred_check_branch
        %108 = sbr.rel (%p106) target = $region20
      $region19: #{tpu_custom_call.1} parent=5 // pred_region
        // Predicated region
        $region21: #{tpu_custom_call.1} parent=19 // pred_check
          %p109 = pneg %p34
        $region22: #{tpu_custom_call.1} parent=19 // pred_check_branch
          %111 = sbr.rel (%p109) target = $region24
        $region23: #{tpu_custom_call.1} parent=19 // pred_region
          %s112 = sand.u32 %s24, 1
          %s113 = scalar_lea.sflag [#allocation3], %s112
          %s114 = sand.u32 %s24, 1
          %s115 = smul.addr %s114, 1512
          %s116 = scalar_lea.vmem [#allocation2], %s115
          %s117 = smul.u32 27, %s14
          %s119 = ssub.s32 24192, 24192
          %120 = vsyncadd %s113, %s119
          %s121 = smul.addr %s117, 7
          %s122 = smul.addr %s121, 128
          %s123 = scalar_lea.hbm %s0, %s122
          %s124 = sshll.u32 %s116, 4
          %s125 = int_to_ptr.vmem [resolvable:$true] %s124
          %130 = dma.hbm_to_vmem [thread:$0]  %s123, 24192, %s125, %s113, 896, 896, 56
        $region24: #{tpu_custom_call.1} parent=19 // pred_fallthru
          _
      $region20: #{tpu_custom_call.1} parent=5 // pred_fallthru
        _
      %p131 = scmp.le.s32.totalorder 1, %s14
      %p132 = scmp.lt.s32.totalorder %s14, 3
      %p133 = pnand %p131, %p132
      %p134 = pneg %p133
      // Predicated region
      $region25: #{tpu_custom_call.1} parent=5 // pred_check
        _
      $region26: #{tpu_custom_call.1} parent=5 // pred_check_branch
        %136 = sbr.rel (%p133) target = $region28
      $region27: #{tpu_custom_call.1} parent=5 // pred_region
        %s137 = ssub.s32 %s14, 1
        %s138 = sand.u32 %s27, 1
        %s139 = scalar_lea.sflag [#allocation3], %s138
        %s140 = sand.u32 %s27, 1
        %s141 = smul.addr %s140, 1512
        %s142 = scalar_lea.vmem [#allocation2], %s141
        // Predicated region
        $region29: #{tpu_custom_call.1} parent=27 // pred_check
          %p143 = pneg %p40
        $region30: #{tpu_custom_call.1} parent=27 // pred_check_branch
          %145 = sbr.rel (%p143) target = $region32
        $region31: #{tpu_custom_call.1} parent=27 // pred_region
          %146 = dma.done %s139, 24192
        $region32: #{tpu_custom_call.1} parent=27 // pred_fallthru
          _
        %s147 = sand.u32 %s27, 1
        %s148 = scalar_lea.sflag [#allocation3], %s147
        %s149 = sand.u32 %s27, 1
        %s150 = smul.addr %s149, 1512
        %s151 = scalar_lea.vmem [#allocation2], %s150
        %p152 = pneg %p40
        %p153 = pneg %p37
        %p154 = pneg %p61
        %p155 = pneg %p58
        %p156 = pneg %p87
        %p157 = pneg %p84
        %s158 = sand.u32 %s74, 1
        %s159 = scalar_lea.sflag [#allocation4], %s158
        %s160 = sand.u32 %s74, 1
        %s161 = smul.addr %s160, 1512
        %s162 = scalar_lea.vmem [#allocation5], %s161
        %s163 = smul.u32 27, %s19
        %s164 = smul.u32 27, %s19
        %s165 = smul.u32 %s19, 216
        %s166 = scalar_lea.vmem %s1, %s165
        %v167 = vld [vmem:[%s166] sm:$0xff]
        %v168 = vld [vmem:[%s166 + $0x8] sm:$0xff]
        %v169 = vld [vmem:[%s166 + $0x10] sm:$0xff]
        %v170 = vld [vmem:[%s166 + $0x18] sm:$0xff]
        %v171 = vld [vmem:[%s166 + $0x20] sm:$0xff]
        %v172 = vld [vmem:[%s166 + $0x28] sm:$0xff]
        %v173 = vld [vmem:[%s166 + $0x30] sm:$0xff]
        %v174 = vld [vmem:[%s166 + $0x38] sm:$0xff]
        %v175 = vld [vmem:[%s166 + $0x40] sm:$0xff]
        %v176 = vld [vmem:[%s166 + $0x48] sm:$0xff]
        %v177 = vld [vmem:[%s166 + $0x50] sm:$0xff]
        %v178 = vld [vmem:[%s166 + $0x58] sm:$0xff]
        %v179 = vld [vmem:[%s166 + $0x60] sm:$0xff]
        %v180 = vld [vmem:[%s166 + $0x68] sm:$0xff]
        %v181 = vld [vmem:[%s166 + $0x70] sm:$0xff]
        %v182 = vld [vmem:[%s166 + $0x78] sm:$0xff]
        %v183 = vld [vmem:[%s166 + $0x80] sm:$0xff]
        %v184 = vld [vmem:[%s166 + $0x88] sm:$0xff]
        %v185 = vld [vmem:[%s166 + $0x90] sm:$0xff]
        %v186 = vld [vmem:[%s166 + $0x98] sm:$0xff]
        %v187 = vld [vmem:[%s166 + $0xa0] sm:$0xff]
        %v188 = vld [vmem:[%s166 + $0xa8] sm:$0xff]
        %v189 = vld [vmem:[%s166 + $0xb0] sm:$0xff]
        %v190 = vld [vmem:[%s166 + $0xb8] sm:$0xff]
        %v191 = vld [vmem:[%s166 + $0xc0] sm:$0xff]
        %v192 = vld [vmem:[%s166 + $0xc8] sm:$0xff]
        %v193 = vld [vmem:[%s166 + $0xd0] sm:$0xff]
        %v194 = vxor.u32 %v167, 2147483648
        %v195 = vxor.u32 %v168, 2147483648
        %v196 = vxor.u32 %v169, 2147483648
        %v197 = vxor.u32 %v170, 2147483648
        %v198 = vxor.u32 %v171, 2147483648
        %v199 = vxor.u32 %v172, 2147483648
        %v200 = vxor.u32 %v173, 2147483648
        %v201 = vxor.u32 %v174, 2147483648
        %v202 = vxor.u32 %v175, 2147483648
        %v203 = vxor.u32 %v176, 2147483648
        %v204 = vxor.u32 %v177, 2147483648
        %v205 = vxor.u32 %v178, 2147483648
        %v206 = vxor.u32 %v179, 2147483648
        %v207 = vxor.u32 %v180, 2147483648
        %v208 = vxor.u32 %v181, 2147483648
        %v209 = vxor.u32 %v182, 2147483648
        %v210 = vxor.u32 %v183, 2147483648
        %v211 = vxor.u32 %v184, 2147483648
        %v212 = vxor.u32 %v185, 2147483648
        %v213 = vxor.u32 %v186, 2147483648
        %v214 = vxor.u32 %v187, 2147483648
        %v215 = vxor.u32 %v188, 2147483648
        %v216 = vxor.u32 %v189, 2147483648
        %v217 = vxor.u32 %v190, 2147483648
        %v218 = vxor.u32 %v191, 2147483648
        %v219 = vxor.u32 %v192, 2147483648
        %v220 = vxor.u32 %v193, 2147483648
        %v221 = vmul.f32 %v194, 1.442695
        %v222 = vpow.pop %v221
        %v223 = vmul.f32 %v195, 1.442695
        %v224 = vpow.pop %v223
        %v225 = vmul.f32 %v196, 1.442695
        %v226 = vpow.pop %v225
        %v227 = vmul.f32 %v197, 1.442695
        %v228 = vpow.pop %v227
        %v229 = vmul.f32 %v198, 1.442695
        %v230 = vpow.pop %v229
        %v231 = vmul.f32 %v199, 1.442695
        %v232 = vpow.pop %v231
        %v233 = vmul.f32 %v200, 1.442695
        %v234 = vpow.pop %v233
        %v235 = vmul.f32 %v201, 1.442695
        %v236 = vpow.pop %v235
        %v237 = vmul.f32 %v202, 1.442695
        %v238 = vpow.pop %v237
        %v239 = vmul.f32 %v203, 1.442695
        %v240 = vpow.pop %v239
        %v241 = vmul.f32 %v204, 1.442695
        %v242 = vpow.pop %v241
        %v243 = vmul.f32 %v205, 1.442695
        %v244 = vpow.pop %v243
        %v245 = vmul.f32 %v206, 1.442695
        %v246 = vpow.pop %v245
        %v247 = vmul.f32 %v207, 1.442695
        %v248 = vpow.pop %v247
        %v249 = vmul.f32 %v208, 1.442695
        %v250 = vpow.pop %v249
        %v251 = vmul.f32 %v209, 1.442695
        %v252 = vpow.pop %v251
        %v253 = vmul.f32 %v210, 1.442695
        %v254 = vpow.pop %v253
        %v255 = vmul.f32 %v211, 1.442695
        %v256 = vpow.pop %v255
        %v257 = vmul.f32 %v212, 1.442695
        %v258 = vpow.pop %v257
        %v259 = vmul.f32 %v213, 1.442695
        %v260 = vpow.pop %v259
        %v261 = vmul.f32 %v214, 1.442695
        %v262 = vpow.pop %v261
        %v263 = vmul.f32 %v215, 1.442695
        %v264 = vpow.pop %v263
        %v265 = vmul.f32 %v216, 1.442695
        %v266 = vpow.pop %v265
        %v267 = vmul.f32 %v217, 1.442695
        %v268 = vpow.pop %v267
        %v269 = vmul.f32 %v218, 1.442695
        %v270 = vpow.pop %v269
        %v271 = vmul.f32 %v219, 1.442695
        %v272 = vpow.pop %v271
        %v273 = vmul.f32 %v220, 1.442695
        %v274 = vpow.pop %v273
        %v275 = vadd.f32 %v222, 1.0
        %v276 = vadd.f32 %v224, 1.0
        %v277 = vadd.f32 %v226, 1.0
        %v278 = vadd.f32 %v228, 1.0
        %v279 = vadd.f32 %v230, 1.0
        %v280 = vadd.f32 %v232, 1.0
        %v281 = vadd.f32 %v234, 1.0
        %v282 = vadd.f32 %v236, 1.0
        %v283 = vadd.f32 %v238, 1.0
        %v284 = vadd.f32 %v240, 1.0
        %v285 = vadd.f32 %v242, 1.0
        %v286 = vadd.f32 %v244, 1.0
        %v287 = vadd.f32 %v246, 1.0
        %v288 = vadd.f32 %v248, 1.0
        %v289 = vadd.f32 %v250, 1.0
        %v290 = vadd.f32 %v252, 1.0
        %v291 = vadd.f32 %v254, 1.0
        %v292 = vadd.f32 %v256, 1.0
        %v293 = vadd.f32 %v258, 1.0
        %v294 = vadd.f32 %v260, 1.0
        %v295 = vadd.f32 %v262, 1.0
        %v296 = vadd.f32 %v264, 1.0
        %v297 = vadd.f32 %v266, 1.0
        %v298 = vadd.f32 %v268, 1.0
        %v299 = vadd.f32 %v270, 1.0
        %v300 = vadd.f32 %v272, 1.0
        %v301 = vadd.f32 %v274, 1.0
        %v302 = vrcp.pop %v275
        %v303 = vmul.f32 1.0, %v302
        %v304 = vrcp.pop %v276
        %v305 = vmul.f32 1.0, %v304
        %v306 = vrcp.pop %v277
        %v307 = vmul.f32 1.0, %v306
        %v308 = vrcp.pop %v278
        %v309 = vmul.f32 1.0, %v308
        %v310 = vrcp.pop %v279
        %v311 = vmul.f32 1.0, %v310
        %v312 = vrcp.pop %v280
        %v313 = vmul.f32 1.0, %v312
        %v314 = vrcp.pop %v281
        %v315 = vmul.f32 1.0, %v314
        %v316 = vrcp.pop %v282
        %v317 = vmul.f32 1.0, %v316
        %v318 = vrcp.pop %v283
        %v319 = vmul.f32 1.0, %v318
        %v320 = vrcp.pop %v284
        %v321 = vmul.f32 1.0, %v320
        %v322 = vrcp.pop %v285
        %v323 = vmul.f32 1.0, %v322
        %v324 = vrcp.pop %v286
        %v325 = vmul.f32 1.0, %v324
        %v326 = vrcp.pop %v287
        %v327 = vmul.f32 1.0, %v326
        %v328 = vrcp.pop %v288
        %v329 = vmul.f32 1.0, %v328
        %v330 = vrcp.pop %v289
        %v331 = vmul.f32 1.0, %v330
        %v332 = vrcp.pop %v290
        %v333 = vmul.f32 1.0, %v332
        %v334 = vrcp.pop %v291
        %v335 = vmul.f32 1.0, %v334
        %v336 = vrcp.pop %v292
        %v337 = vmul.f32 1.0, %v336
        %v338 = vrcp.pop %v293
        %v339 = vmul.f32 1.0, %v338
        %v340 = vrcp.pop %v294
        %v341 = vmul.f32 1.0, %v340
        %v342 = vrcp.pop %v295
        %v343 = vmul.f32 1.0, %v342
        %v344 = vrcp.pop %v296
        %v345 = vmul.f32 1.0, %v344
        %v346 = vrcp.pop %v297
        %v347 = vmul.f32 1.0, %v346
        %v348 = vrcp.pop %v298
        %v349 = vmul.f32 1.0, %v348
        %v350 = vrcp.pop %v299
        %v351 = vmul.f32 1.0, %v350
        %v352 = vrcp.pop %v300
        %v353 = vmul.f32 1.0, %v352
        %v354 = vrcp.pop %v301
        %v355 = vmul.f32 1.0, %v354
        %v356 = vld [vmem:[%s142] sm:$0xff]
        %v357 = vld [vmem:[%s142 + $0x8] sm:$0xff]
        %v358 = vld [vmem:[%s142 + $0x10] sm:$0xff]
        %v359 = vld [vmem:[%s142 + $0x18] sm:$0xff]
        %v360 = vld [vmem:[%s142 + $0x20] sm:$0xff]
        %v361 = vld [vmem:[%s142 + $0x28] sm:$0xff]
        %v362 = vld [vmem:[%s142 + $0x30] sm:$0xff]
        %v363 = vld [vmem:[%s142 + $0x38] sm:$0xff]
        %v364 = vld [vmem:[%s142 + $0x40] sm:$0xff]
        %v365 = vld [vmem:[%s142 + $0x48] sm:$0xff]
        %v366 = vld [vmem:[%s142 + $0x50] sm:$0xff]
        %v367 = vld [vmem:[%s142 + $0x58] sm:$0xff]
        %v368 = vld [vmem:[%s142 + $0x60] sm:$0xff]
        %v369 = vld [vmem:[%s142 + $0x68] sm:$0xff]
        %v370 = vld [vmem:[%s142 + $0x70] sm:$0xff]
        %v371 = vld [vmem:[%s142 + $0x78] sm:$0xff]
        %v372 = vld [vmem:[%s142 + $0x80] sm:$0xff]
        %v373 = vld [vmem:[%s142 + $0x88] sm:$0xff]
        %v374 = vld [vmem:[%s142 + $0x90] sm:$0xff]
        %v375 = vld [vmem:[%s142 + $0x98] sm:$0xff]
        %v376 = vld [vmem:[%s142 + $0xa0] sm:$0xff]
        %v377 = vld [vmem:[%s142 + $0xa8] sm:$0xff]
        %v378 = vld [vmem:[%s142 + $0xb0] sm:$0xff]
        %v379 = vld [vmem:[%s142 + $0xb8] sm:$0xff]
        %v380 = vld [vmem:[%s142 + $0xc0] sm:$0xff]
        %v381 = vld [vmem:[%s142 + $0xc8] sm:$0xff]
        %v382 = vld [vmem:[%s142 + $0xd0] sm:$0xff]
        %v383 = vld [vmem:[%s142 + $0xd8] sm:$0xff]
        %v384 = vld [vmem:[%s142 + $0xe0] sm:$0xff]
        %v385 = vld [vmem:[%s142 + $0xe8] sm:$0xff]
        %v386 = vld [vmem:[%s142 + $0xf0] sm:$0xff]
        %v387 = vld [vmem:[%s142 + $0xf8] sm:$0xff]
        %v388 = vld [vmem:[%s142 + $0x100] sm:$0xff]
        %v389 = vld [vmem:[%s142 + $0x108] sm:$0xff]
        %v390 = vld [vmem:[%s142 + $0x110] sm:$0xff]
        %v391 = vld [vmem:[%s142 + $0x118] sm:$0xff]
        %v392 = vld [vmem:[%s142 + $0x120] sm:$0xff]
        %v393 = vld [vmem:[%s142 + $0x128] sm:$0xff]
        %v394 = vld [vmem:[%s142 + $0x130] sm:$0xff]
        %v395 = vld [vmem:[%s142 + $0x138] sm:$0xff]
        %v396 = vld [vmem:[%s142 + $0x140] sm:$0xff]
        %v397 = vld [vmem:[%s142 + $0x148] sm:$0xff]
        %v398 = vld [vmem:[%s142 + $0x150] sm:$0xff]
        %v399 = vld [vmem:[%s142 + $0x158] sm:$0xff]
        %v400 = vld [vmem:[%s142 + $0x160] sm:$0xff]
        %v401 = vld [vmem:[%s142 + $0x168] sm:$0xff]
        %v402 = vld [vmem:[%s142 + $0x170] sm:$0xff]
        %v403 = vld [vmem:[%s142 + $0x178] sm:$0xff]
        %v404 = vld [vmem:[%s142 + $0x180] sm:$0xff]
        %v405 = vld [vmem:[%s142 + $0x188] sm:$0xff]
        %v406 = vld [vmem:[%s142 + $0x190] sm:$0xff]
        %v407 = vld [vmem:[%s142 + $0x198] sm:$0xff]
        %v408 = vld [vmem:[%s142 + $0x1a0] sm:$0xff]
        %v409 = vld [vmem:[%s142 + $0x1a8] sm:$0xff]
        %v410 = vld [vmem:[%s142 + $0x1b0] sm:$0xff]
        %v411 = vld [vmem:[%s142 + $0x1b8] sm:$0xff]
        %v412 = vld [vmem:[%s142 + $0x1c0] sm:$0xff]
        %v413 = vld [vmem:[%s142 + $0x1c8] sm:$0xff]
        %v414 = vld [vmem:[%s142 + $0x1d0] sm:$0xff]
        %v415 = vld [vmem:[%s142 + $0x1d8] sm:$0xff]
        %v416 = vld [vmem:[%s142 + $0x1e0] sm:$0xff]
        %v417 = vld [vmem:[%s142 + $0x1e8] sm:$0xff]
        %v418 = vld [vmem:[%s142 + $0x1f0] sm:$0xff]
        %v419 = vld [vmem:[%s142 + $0x1f8] sm:$0xff]
        %v420 = vld [vmem:[%s142 + $0x200] sm:$0xff]
        %v421 = vld [vmem:[%s142 + $0x208] sm:$0xff]
        %v422 = vld [vmem:[%s142 + $0x210] sm:$0xff]
        %v423 = vld [vmem:[%s142 + $0x218] sm:$0xff]
        %v424 = vld [vmem:[%s142 + $0x220] sm:$0xff]
        %v425 = vld [vmem:[%s142 + $0x228] sm:$0xff]
        %v426 = vld [vmem:[%s142 + $0x230] sm:$0xff]
        %v427 = vld [vmem:[%s142 + $0x238] sm:$0xff]
        %v428 = vld [vmem:[%s142 + $0x240] sm:$0xff]
        %v429 = vld [vmem:[%s142 + $0x248] sm:$0xff]
        %v430 = vld [vmem:[%s142 + $0x250] sm:$0xff]
        %v431 = vld [vmem:[%s142 + $0x258] sm:$0xff]
        %v432 = vld [vmem:[%s142 + $0x260] sm:$0xff]
        %v433 = vld [vmem:[%s142 + $0x268] sm:$0xff]
        %v434 = vld [vmem:[%s142 + $0x270] sm:$0xff]
        %v435 = vld [vmem:[%s142 + $0x278] sm:$0xff]
        %v436 = vld [vmem:[%s142 + $0x280] sm:$0xff]
        %v437 = vld [vmem:[%s142 + $0x288] sm:$0xff]
        %v438 = vld [vmem:[%s142 + $0x290] sm:$0xff]
        %v439 = vld [vmem:[%s142 + $0x298] sm:$0xff]
        %v440 = vld [vmem:[%s142 + $0x2a0] sm:$0xff]
        %v441 = vld [vmem:[%s142 + $0x2a8] sm:$0xff]
        %v442 = vld [vmem:[%s142 + $0x2b0] sm:$0xff]
        %v443 = vld [vmem:[%s142 + $0x2b8] sm:$0xff]
        %v444 = vld [vmem:[%s142 + $0x2c0] sm:$0xff]
        %v445 = vld [vmem:[%s142 + $0x2c8] sm:$0xff]
        %v446 = vld [vmem:[%s142 + $0x2d0] sm:$0xff]
        %v447 = vld [vmem:[%s142 + $0x2d8] sm:$0xff]
        %v448 = vld [vmem:[%s142 + $0x2e0] sm:$0xff]
        %v449 = vld [vmem:[%s142 + $0x2e8] sm:$0xff]
        %v450 = vld [vmem:[%s142 + $0x2f0] sm:$0xff]
        %v451 = vld [vmem:[%s142 + $0x2f8] sm:$0xff]
        %v452 = vld [vmem:[%s142 + $0x300] sm:$0xff]
        %v453 = vld [vmem:[%s142 + $0x308] sm:$0xff]
        %v454 = vld [vmem:[%s142 + $0x310] sm:$0xff]
        %v455 = vld [vmem:[%s142 + $0x318] sm:$0xff]
        %v456 = vld [vmem:[%s142 + $0x320] sm:$0xff]
        %v457 = vld [vmem:[%s142 + $0x328] sm:$0xff]
        %v458 = vld [vmem:[%s142 + $0x330] sm:$0xff]
        %v459 = vld [vmem:[%s142 + $0x338] sm:$0xff]
        %v460 = vld [vmem:[%s142 + $0x340] sm:$0xff]
        %v461 = vld [vmem:[%s142 + $0x348] sm:$0xff]
        %v462 = vld [vmem:[%s142 + $0x350] sm:$0xff]
        %v463 = vld [vmem:[%s142 + $0x358] sm:$0xff]
        %v464 = vld [vmem:[%s142 + $0x360] sm:$0xff]
        %v465 = vld [vmem:[%s142 + $0x368] sm:$0xff]
        %v466 = vld [vmem:[%s142 + $0x370] sm:$0xff]
        %v467 = vld [vmem:[%s142 + $0x378] sm:$0xff]
        %v468 = vld [vmem:[%s142 + $0x380] sm:$0xff]
        %v469 = vld [vmem:[%s142 + $0x388] sm:$0xff]
        %v470 = vld [vmem:[%s142 + $0x390] sm:$0xff]
        %v471 = vld [vmem:[%s142 + $0x398] sm:$0xff]
        %v472 = vld [vmem:[%s142 + $0x3a0] sm:$0xff]
        %v473 = vld [vmem:[%s142 + $0x3a8] sm:$0xff]
        %v474 = vld [vmem:[%s142 + $0x3b0] sm:$0xff]
        %v475 = vld [vmem:[%s142 + $0x3b8] sm:$0xff]
        %v476 = vld [vmem:[%s142 + $0x3c0] sm:$0xff]
        %v477 = vld [vmem:[%s142 + $0x3c8] sm:$0xff]
        %v478 = vld [vmem:[%s142 + $0x3d0] sm:$0xff]
        %v479 = vld [vmem:[%s142 + $0x3d8] sm:$0xff]
        %v480 = vld [vmem:[%s142 + $0x3e0] sm:$0xff]
        %v481 = vld [vmem:[%s142 + $0x3e8] sm:$0xff]
        %v482 = vld [vmem:[%s142 + $0x3f0] sm:$0xff]
        %v483 = vld [vmem:[%s142 + $0x3f8] sm:$0xff]
        %v484 = vld [vmem:[%s142 + $0x400] sm:$0xff]
        %v485 = vld [vmem:[%s142 + $0x408] sm:$0xff]
        %v486 = vld [vmem:[%s142 + $0x410] sm:$0xff]
        %v487 = vld [vmem:[%s142 + $0x418] sm:$0xff]
        %v488 = vld [vmem:[%s142 + $0x420] sm:$0xff]
        %v489 = vld [vmem:[%s142 + $0x428] sm:$0xff]
        %v490 = vld [vmem:[%s142 + $0x430] sm:$0xff]
        %v491 = vld [vmem:[%s142 + $0x438] sm:$0xff]
        %v492 = vld [vmem:[%s142 + $0x440] sm:$0xff]
        %v493 = vld [vmem:[%s142 + $0x448] sm:$0xff]
        %v494 = vld [vmem:[%s142 + $0x450] sm:$0xff]
        %v495 = vld [vmem:[%s142 + $0x458] sm:$0xff]
        %v496 = vld [vmem:[%s142 + $0x460] sm:$0xff]
        %v497 = vld [vmem:[%s142 + $0x468] sm:$0xff]
        %v498 = vld [vmem:[%s142 + $0x470] sm:$0xff]
        %v499 = vld [vmem:[%s142 + $0x478] sm:$0xff]
        %v500 = vld [vmem:[%s142 + $0x480] sm:$0xff]
        %v501 = vld [vmem:[%s142 + $0x488] sm:$0xff]
        %v502 = vld [vmem:[%s142 + $0x490] sm:$0xff]
        %v503 = vld [vmem:[%s142 + $0x498] sm:$0xff]
        %v504 = vld [vmem:[%s142 + $0x4a0] sm:$0xff]
        %v505 = vld [vmem:[%s142 + $0x4a8] sm:$0xff]
        %v506 = vld [vmem:[%s142 + $0x4b0] sm:$0xff]
        %v507 = vld [vmem:[%s142 + $0x4b8] sm:$0xff]
        %v508 = vld [vmem:[%s142 + $0x4c0] sm:$0xff]
        %v509 = vld [vmem:[%s142 + $0x4c8] sm:$0xff]
        %v510 = vld [vmem:[%s142 + $0x4d0] sm:$0xff]
        %v511 = vld [vmem:[%s142 + $0x4d8] sm:$0xff]
        %v512 = vld [vmem:[%s142 + $0x4e0] sm:$0xff]
        %v513 = vld [vmem:[%s142 + $0x4e8] sm:$0xff]
        %v514 = vld [vmem:[%s142 + $0x4f0] sm:$0xff]
        %v515 = vld [vmem:[%s142 + $0x4f8] sm:$0xff]
        %v516 = vld [vmem:[%s142 + $0x500] sm:$0xff]
        %v517 = vld [vmem:[%s142 + $0x508] sm:$0xff]
        %v518 = vld [vmem:[%s142 + $0x510] sm:$0xff]
        %v519 = vld [vmem:[%s142 + $0x518] sm:$0xff]
        %v520 = vld [vmem:[%s142 + $0x520] sm:$0xff]
        %v521 = vld [vmem:[%s142 + $0x528] sm:$0xff]
        %v522 = vld [vmem:[%s142 + $0x530] sm:$0xff]
        %v523 = vld [vmem:[%s142 + $0x538] sm:$0xff]
        %v524 = vld [vmem:[%s142 + $0x540] sm:$0xff]
        %v525 = vld [vmem:[%s142 + $0x548] sm:$0xff]
        %v526 = vld [vmem:[%s142 + $0x550] sm:$0xff]
        %v527 = vld [vmem:[%s142 + $0x558] sm:$0xff]
        %v528 = vld [vmem:[%s142 + $0x560] sm:$0xff]
        %v529 = vld [vmem:[%s142 + $0x568] sm:$0xff]
        %v530 = vld [vmem:[%s142 + $0x570] sm:$0xff]
        %v531 = vld [vmem:[%s142 + $0x578] sm:$0xff]
        %v532 = vld [vmem:[%s142 + $0x580] sm:$0xff]
        %v533 = vld [vmem:[%s142 + $0x588] sm:$0xff]
        %v534 = vld [vmem:[%s142 + $0x590] sm:$0xff]
        %v535 = vld [vmem:[%s142 + $0x598] sm:$0xff]
        %v536 = vld [vmem:[%s142 + $0x5a0] sm:$0xff]
        %v537 = vld [vmem:[%s142 + $0x5a8] sm:$0xff]
        %v538 = vld [vmem:[%s142 + $0x5b0] sm:$0xff]
        %v539 = vld [vmem:[%s142 + $0x5b8] sm:$0xff]
        %v540 = vld [vmem:[%s142 + $0x5c0] sm:$0xff]
        %v541 = vld [vmem:[%s142 + $0x5c8] sm:$0xff]
        %v542 = vld [vmem:[%s142 + $0x5d0] sm:$0xff]
        %v543 = vld [vmem:[%s142 + $0x5d8] sm:$0xff]
        %v544 = vld [vmem:[%s142 + $0x5e0] sm:$0xff]
        %546 = vset.pattern.permute.xlu0 0
        %547 = vperm.xlu0 %546, %v303
        %v548 = vpop.permute.xlu0 %547
        %551 = vset.pattern.permute.xlu0 0
        %552 = vperm.xlu0 %551, %v305
        %v553 = vpop.permute.xlu0 %552
        %556 = vset.pattern.permute.xlu0 0
        %557 = vperm.xlu0 %556, %v307
        %v558 = vpop.permute.xlu0 %557
        %561 = vset.pattern.permute.xlu0 0
        %562 = vperm.xlu0 %561, %v309
        %v563 = vpop.permute.xlu0 %562
        %566 = vset.pattern.permute.xlu0 0
        %567 = vperm.xlu0 %566, %v311
        %v568 = vpop.permute.xlu0 %567
        %571 = vset.pattern.permute.xlu0 0
        %572 = vperm.xlu0 %571, %v313
        %v573 = vpop.permute.xlu0 %572
        %576 = vset.pattern.permute.xlu0 0
        %577 = vperm.xlu0 %576, %v315
        %v578 = vpop.permute.xlu0 %577
        %581 = vset.pattern.permute.xlu0 0
        %582 = vperm.xlu0 %581, %v317
        %v583 = vpop.permute.xlu0 %582
        %586 = vset.pattern.permute.xlu0 0
        %587 = vperm.xlu0 %586, %v319
        %v588 = vpop.permute.xlu0 %587
        %591 = vset.pattern.permute.xlu0 0
        %592 = vperm.xlu0 %591, %v321
        %v593 = vpop.permute.xlu0 %592
        %596 = vset.pattern.permute.xlu0 0
        %597 = vperm.xlu0 %596, %v323
        %v598 = vpop.permute.xlu0 %597
        %601 = vset.pattern.permute.xlu0 0
        %602 = vperm.xlu0 %601, %v325
        %v603 = vpop.permute.xlu0 %602
        %606 = vset.pattern.permute.xlu0 0
        %607 = vperm.xlu0 %606, %v327
        %v608 = vpop.permute.xlu0 %607
        %611 = vset.pattern.permute.xlu0 0
        %612 = vperm.xlu0 %611, %v329
        %v613 = vpop.permute.xlu0 %612
        %616 = vset.pattern.permute.xlu0 0
        %617 = vperm.xlu0 %616, %v331
        %v618 = vpop.permute.xlu0 %617
        %621 = vset.pattern.permute.xlu0 0
        %622 = vperm.xlu0 %621, %v333
        %v623 = vpop.permute.xlu0 %622
        %626 = vset.pattern.permute.xlu0 0
        %627 = vperm.xlu0 %626, %v335
        %v628 = vpop.permute.xlu0 %627
        %631 = vset.pattern.permute.xlu0 0
        %632 = vperm.xlu0 %631, %v337
        %v633 = vpop.permute.xlu0 %632
        %636 = vset.pattern.permute.xlu0 0
        %637 = vperm.xlu0 %636, %v339
        %v638 = vpop.permute.xlu0 %637
        %641 = vset.pattern.permute.xlu0 0
        %642 = vperm.xlu0 %641, %v341
        %v643 = vpop.permute.xlu0 %642
        %646 = vset.pattern.permute.xlu0 0
        %647 = vperm.xlu0 %646, %v343
        %v648 = vpop.permute.xlu0 %647
        %651 = vset.pattern.permute.xlu0 0
        %652 = vperm.xlu0 %651, %v345
        %v653 = vpop.permute.xlu0 %652
        %656 = vset.pattern.permute.xlu0 0
        %657 = vperm.xlu0 %656, %v347
        %v658 = vpop.permute.xlu0 %657
        %661 = vset.pattern.permute.xlu0 0
        %662 = vperm.xlu0 %661, %v349
        %v663 = vpop.permute.xlu0 %662
        %666 = vset.pattern.permute.xlu0 0
        %667 = vperm.xlu0 %666, %v351
        %v668 = vpop.permute.xlu0 %667
        %671 = vset.pattern.permute.xlu0 0
        %672 = vperm.xlu0 %671, %v353
        %v673 = vpop.permute.xlu0 %672
        %676 = vset.pattern.permute.xlu0 0
        %677 = vperm.xlu0 %676, %v355
        %v678 = vpop.permute.xlu0 %677
        %v680 = vmul.f32 %v356, %v548
        %v681 = vmul.f32 %v357, %v548
        %v682 = vmul.f32 %v358, %v548
        %v683 = vmul.f32 %v359, %v548
        %v684 = vmul.f32 %v360, %v548
        %v685 = vmul.f32 %v361, %v548
        %v686 = vmul.f32 %v362, %v548
        %v687 = vmul.f32 %v363, %v553
        %v688 = vmul.f32 %v364, %v553
        %v689 = vmul.f32 %v365, %v553
        %v690 = vmul.f32 %v366, %v553
        %v691 = vmul.f32 %v367, %v553
        %v692 = vmul.f32 %v368, %v553
        %v693 = vmul.f32 %v369, %v553
        %v694 = vmul.f32 %v370, %v558
        %v695 = vmul.f32 %v371, %v558
        %v696 = vmul.f32 %v372, %v558
        %v697 = vmul.f32 %v373, %v558
        %v698 = vmul.f32 %v374, %v558
        %v699 = vmul.f32 %v375, %v558
        %v700 = vmul.f32 %v376, %v558
        %v701 = vmul.f32 %v377, %v563
        %v702 = vmul.f32 %v378, %v563
        %v703 = vmul.f32 %v379, %v563
        %v704 = vmul.f32 %v380, %v563
        %v705 = vmul.f32 %v381, %v563
        %v706 = vmul.f32 %v382, %v563
        %v707 = vmul.f32 %v383, %v563
        %v708 = vmul.f32 %v384, %v568
        %v709 = vmul.f32 %v385, %v568
        %v710 = vmul.f32 %v386, %v568
        %v711 = vmul.f32 %v387, %v568
        %v712 = vmul.f32 %v388, %v568
        %v713 = vmul.f32 %v389, %v568
        %v714 = vmul.f32 %v390, %v568
        %v715 = vmul.f32 %v391, %v573
        %v716 = vmul.f32 %v392, %v573
        %v717 = vmul.f32 %v393, %v573
        %v718 = vmul.f32 %v394, %v573
        %v719 = vmul.f32 %v395, %v573
        %v720 = vmul.f32 %v396, %v573
        %v721 = vmul.f32 %v397, %v573
        %v722 = vmul.f32 %v398, %v578
        %v723 = vmul.f32 %v399, %v578
        %v724 = vmul.f32 %v400, %v578
        %v725 = vmul.f32 %v401, %v578
        %v726 = vmul.f32 %v402, %v578
        %v727 = vmul.f32 %v403, %v578
        %v728 = vmul.f32 %v404, %v578
        %v729 = vmul.f32 %v405, %v583
        %v730 = vmul.f32 %v406, %v583
        %v731 = vmul.f32 %v407, %v583
        %v732 = vmul.f32 %v408, %v583
        %v733 = vmul.f32 %v409, %v583
        %v734 = vmul.f32 %v410, %v583
        %v735 = vmul.f32 %v411, %v583
        %v736 = vmul.f32 %v412, %v588
        %v737 = vmul.f32 %v413, %v588
        %v738 = vmul.f32 %v414, %v588
        %v739 = vmul.f32 %v415, %v588
        %v740 = vmul.f32 %v416, %v588
        %v741 = vmul.f32 %v417, %v588
        %v742 = vmul.f32 %v418, %v588
        %v743 = vmul.f32 %v419, %v593
        %v744 = vmul.f32 %v420, %v593
        %v745 = vmul.f32 %v421, %v593
        %v746 = vmul.f32 %v422, %v593
        %v747 = vmul.f32 %v423, %v593
        %v748 = vmul.f32 %v424, %v593
        %v749 = vmul.f32 %v425, %v593
        %v750 = vmul.f32 %v426, %v598
        %v751 = vmul.f32 %v427, %v598
        %v752 = vmul.f32 %v428, %v598
        %v753 = vmul.f32 %v429, %v598
        %v754 = vmul.f32 %v430, %v598
        %v755 = vmul.f32 %v431, %v598
        %v756 = vmul.f32 %v432, %v598
        %v757 = vmul.f32 %v433, %v603
        %v758 = vmul.f32 %v434, %v603
        %v759 = vmul.f32 %v435, %v603
        %v760 = vmul.f32 %v436, %v603
        %v761 = vmul.f32 %v437, %v603
        %v762 = vmul.f32 %v438, %v603
        %v763 = vmul.f32 %v439, %v603
        %v764 = vmul.f32 %v440, %v608
        %v765 = vmul.f32 %v441, %v608
        %v766 = vmul.f32 %v442, %v608
        %v767 = vmul.f32 %v443, %v608
        %v768 = vmul.f32 %v444, %v608
        %v769 = vmul.f32 %v445, %v608
        %v770 = vmul.f32 %v446, %v608
        %v771 = vmul.f32 %v447, %v613
        %v772 = vmul.f32 %v448, %v613
        %v773 = vmul.f32 %v449, %v613
        %v774 = vmul.f32 %v450, %v613
        %v775 = vmul.f32 %v451, %v613
        %v776 = vmul.f32 %v452, %v613
        %v777 = vmul.f32 %v453, %v613
        %v778 = vmul.f32 %v454, %v618
        %v779 = vmul.f32 %v455, %v618
        %v780 = vmul.f32 %v456, %v618
        %v781 = vmul.f32 %v457, %v618
        %v782 = vmul.f32 %v458, %v618
        %v783 = vmul.f32 %v459, %v618
        %v784 = vmul.f32 %v460, %v618
        %v785 = vmul.f32 %v461, %v623
        %v786 = vmul.f32 %v462, %v623
        %v787 = vmul.f32 %v463, %v623
        %v788 = vmul.f32 %v464, %v623
        %v789 = vmul.f32 %v465, %v623
        %v790 = vmul.f32 %v466, %v623
        %v791 = vmul.f32 %v467, %v623
        %v792 = vmul.f32 %v468, %v628
        %v793 = vmul.f32 %v469, %v628
        %v794 = vmul.f32 %v470, %v628
        %v795 = vmul.f32 %v471, %v628
        %v796 = vmul.f32 %v472, %v628
        %v797 = vmul.f32 %v473, %v628
        %v798 = vmul.f32 %v474, %v628
        %v799 = vmul.f32 %v475, %v633
        %v800 = vmul.f32 %v476, %v633
        %v801 = vmul.f32 %v477, %v633
        %v802 = vmul.f32 %v478, %v633
        %v803 = vmul.f32 %v479, %v633
        %v804 = vmul.f32 %v480, %v633
        %v805 = vmul.f32 %v481, %v633
        %v806 = vmul.f32 %v482, %v638
        %v807 = vmul.f32 %v483, %v638
        %v808 = vmul.f32 %v484, %v638
        %v809 = vmul.f32 %v485, %v638
        %v810 = vmul.f32 %v486, %v638
        %v811 = vmul.f32 %v487, %v638
        %v812 = vmul.f32 %v488, %v638
        %v813 = vmul.f32 %v489, %v643
        %v814 = vmul.f32 %v490, %v643
        %v815 = vmul.f32 %v491, %v643
        %v816 = vmul.f32 %v492, %v643
        %v817 = vmul.f32 %v493, %v643
        %v818 = vmul.f32 %v494, %v643
        %v819 = vmul.f32 %v495, %v643
        %v820 = vmul.f32 %v496, %v648
        %v821 = vmul.f32 %v497, %v648
        %v822 = vmul.f32 %v498, %v648
        %v823 = vmul.f32 %v499, %v648
        %v824 = vmul.f32 %v500, %v648
        %v825 = vmul.f32 %v501, %v648
        %v826 = vmul.f32 %v502, %v648
        %v827 = vmul.f32 %v503, %v653
        %v828 = vmul.f32 %v504, %v653
        %v829 = vmul.f32 %v505, %v653
        %v830 = vmul.f32 %v506, %v653
        %v831 = vmul.f32 %v507, %v653
        %v832 = vmul.f32 %v508, %v653
        %v833 = vmul.f32 %v509, %v653
        %v834 = vmul.f32 %v510, %v658
        %v835 = vmul.f32 %v511, %v658
        %v836 = vmul.f32 %v512, %v658
        %v837 = vmul.f32 %v513, %v658
        %v838 = vmul.f32 %v514, %v658
        %v839 = vmul.f32 %v515, %v658
        %v840 = vmul.f32 %v516, %v658
        %v841 = vmul.f32 %v517, %v663
        %v842 = vmul.f32 %v518, %v663
        %v843 = vmul.f32 %v519, %v663
        %v844 = vmul.f32 %v520, %v663
        %v845 = vmul.f32 %v521, %v663
        %v846 = vmul.f32 %v522, %v663
        %v847 = vmul.f32 %v523, %v663
        %v848 = vmul.f32 %v524, %v668
        %v849 = vmul.f32 %v525, %v668
        %v850 = vmul.f32 %v526, %v668
        %v851 = vmul.f32 %v527, %v668
        %v852 = vmul.f32 %v528, %v668
        %v853 = vmul.f32 %v529, %v668
        %v854 = vmul.f32 %v530, %v668
        %v855 = vmul.f32 %v531, %v673
        %v856 = vmul.f32 %v532, %v673
        %v857 = vmul.f32 %v533, %v673
        %v858 = vmul.f32 %v534, %v673
        %v859 = vmul.f32 %v535, %v673
        %v860 = vmul.f32 %v536, %v673
        %v861 = vmul.f32 %v537, %v673
        %v862 = vmul.f32 %v538, %v678
        %v863 = vmul.f32 %v539, %v678
        %v864 = vmul.f32 %v540, %v678
        %v865 = vmul.f32 %v541, %v678
        %v866 = vmul.f32 %v542, %v678
        %v867 = vmul.f32 %v543, %v678
        %v868 = vmul.f32 %v544, %v678
        %869 = vst [vmem:[%s162] sm:$0xff] %v680
        %870 = vst [vmem:[%s162 + $0x8] sm:$0xff] %v681
        %871 = vst [vmem:[%s162 + $0x10] sm:$0xff] %v682
        %872 = vst [vmem:[%s162 + $0x18] sm:$0xff] %v683
        %873 = vst [vmem:[%s162 + $0x20] sm:$0xff] %v684
        %874 = vst [vmem:[%s162 + $0x28] sm:$0xff] %v685
        %vm875 = vcmask 130048
        %876 = vst.msk [vmem:[%s162 + $0x30] sm:$0xff] %vm875, %v686
        %877 = vst [vmem:[%s162 + $0x38] sm:$0xff] %v687
        %878 = vst [vmem:[%s162 + $0x40] sm:$0xff] %v688
        %879 = vst [vmem:[%s162 + $0x48] sm:$0xff] %v689
        %880 = vst [vmem:[%s162 + $0x50] sm:$0xff] %v690
        %881 = vst [vmem:[%s162 + $0x58] sm:$0xff] %v691
        %882 = vst [vmem:[%s162 + $0x60] sm:$0xff] %v692
        %883 = vst.msk [vmem:[%s162 + $0x68] sm:$0xff] %vm875, %v693
        %884 = vst [vmem:[%s162 + $0x70] sm:$0xff] %v694
        %885 = vst [vmem:[%s162 + $0x78] sm:$0xff] %v695
        %886 = vst [vmem:[%s162 + $0x80] sm:$0xff] %v696
        %887 = vst [vmem:[%s162 + $0x88] sm:$0xff] %v697
        %888 = vst [vmem:[%s162 + $0x90] sm:$0xff] %v698
        %889 = vst [vmem:[%s162 + $0x98] sm:$0xff] %v699
        %890 = vst.msk [vmem:[%s162 + $0xa0] sm:$0xff] %vm875, %v700
        %891 = vst [vmem:[%s162 + $0xa8] sm:$0xff] %v701
        %892 = vst [vmem:[%s162 + $0xb0] sm:$0xff] %v702
        %893 = vst [vmem:[%s162 + $0xb8] sm:$0xff] %v703
        %894 = vst [vmem:[%s162 + $0xc0] sm:$0xff] %v704
        %895 = vst [vmem:[%s162 + $0xc8] sm:$0xff] %v705
        %896 = vst [vmem:[%s162 + $0xd0] sm:$0xff] %v706
        %897 = vst.msk [vmem:[%s162 + $0xd8] sm:$0xff] %vm875, %v707
        %898 = vst [vmem:[%s162 + $0xe0] sm:$0xff] %v708
        %899 = vst [vmem:[%s162 + $0xe8] sm:$0xff] %v709
        %900 = vst [vmem:[%s162 + $0xf0] sm:$0xff] %v710
        %901 = vst [vmem:[%s162 + $0xf8] sm:$0xff] %v711
        %902 = vst [vmem:[%s162 + $0x100] sm:$0xff] %v712
        %903 = vst [vmem:[%s162 + $0x108] sm:$0xff] %v713
        %904 = vst.msk [vmem:[%s162 + $0x110] sm:$0xff] %vm875, %v714
        %905 = vst [vmem:[%s162 + $0x118] sm:$0xff] %v715
        %906 = vst [vmem:[%s162 + $0x120] sm:$0xff] %v716
        %907 = vst [vmem:[%s162 + $0x128] sm:$0xff] %v717
        %908 = vst [vmem:[%s162 + $0x130] sm:$0xff] %v718
        %909 = vst [vmem:[%s162 + $0x138] sm:$0xff] %v719
        %910 = vst [vmem:[%s162 + $0x140] sm:$0xff] %v720
        %911 = vst.msk [vmem:[%s162 + $0x148] sm:$0xff] %vm875, %v721
        %912 = vst [vmem:[%s162 + $0x150] sm:$0xff] %v722
        %913 = vst [vmem:[%s162 + $0x158] sm:$0xff] %v723
        %914 = vst [vmem:[%s162 + $0x160] sm:$0xff] %v724
        %915 = vst [vmem:[%s162 + $0x168] sm:$0xff] %v725
        %916 = vst [vmem:[%s162 + $0x170] sm:$0xff] %v726
        %917 = vst [vmem:[%s162 + $0x178] sm:$0xff] %v727
        %918 = vst.msk [vmem:[%s162 + $0x180] sm:$0xff] %vm875, %v728
        %919 = vst [vmem:[%s162 + $0x188] sm:$0xff] %v729
        %920 = vst [vmem:[%s162 + $0x190] sm:$0xff] %v730
        %921 = vst [vmem:[%s162 + $0x198] sm:$0xff] %v731
        %922 = vst [vmem:[%s162 + $0x1a0] sm:$0xff] %v732
        %923 = vst [vmem:[%s162 + $0x1a8] sm:$0xff] %v733
        %924 = vst [vmem:[%s162 + $0x1b0] sm:$0xff] %v734
        %925 = vst.msk [vmem:[%s162 + $0x1b8] sm:$0xff] %vm875, %v735
        %926 = vst [vmem:[%s162 + $0x1c0] sm:$0xff] %v736
        %927 = vst [vmem:[%s162 + $0x1c8] sm:$0xff] %v737
        %928 = vst [vmem:[%s162 + $0x1d0] sm:$0xff] %v738
        %929 = vst [vmem:[%s162 + $0x1d8] sm:$0xff] %v739
        %930 = vst [vmem:[%s162 + $0x1e0] sm:$0xff] %v740
        %931 = vst [vmem:[%s162 + $0x1e8] sm:$0xff] %v741
        %932 = vst.msk [vmem:[%s162 + $0x1f0] sm:$0xff] %vm875, %v742
        %933 = vst [vmem:[%s162 + $0x1f8] sm:$0xff] %v743
        %934 = vst [vmem:[%s162 + $0x200] sm:$0xff] %v744
        %935 = vst [vmem:[%s162 + $0x208] sm:$0xff] %v745
        %936 = vst [vmem:[%s162 + $0x210] sm:$0xff] %v746
        %937 = vst [vmem:[%s162 + $0x218] sm:$0xff] %v747
        %938 = vst [vmem:[%s162 + $0x220] sm:$0xff] %v748
        %939 = vst.msk [vmem:[%s162 + $0x228] sm:$0xff] %vm875, %v749
        %940 = vst [vmem:[%s162 + $0x230] sm:$0xff] %v750
        %941 = vst [vmem:[%s162 + $0x238] sm:$0xff] %v751
        %942 = vst [vmem:[%s162 + $0x240] sm:$0xff] %v752
        %943 = vst [vmem:[%s162 + $0x248] sm:$0xff] %v753
        %944 = vst [vmem:[%s162 + $0x250] sm:$0xff] %v754
        %945 = vst [vmem:[%s162 + $0x258] sm:$0xff] %v755
        %946 = vst.msk [vmem:[%s162 + $0x260] sm:$0xff] %vm875, %v756
        %947 = vst [vmem:[%s162 + $0x268] sm:$0xff] %v757
        %948 = vst [vmem:[%s162 + $0x270] sm:$0xff] %v758
        %949 = vst [vmem:[%s162 + $0x278] sm:$0xff] %v759
        %950 = vst [vmem:[%s162 + $0x280] sm:$0xff] %v760
        %951 = vst [vmem:[%s162 + $0x288] sm:$0xff] %v761
        %952 = vst [vmem:[%s162 + $0x290] sm:$0xff] %v762
        %953 = vst.msk [vmem:[%s162 + $0x298] sm:$0xff] %vm875, %v763
        %954 = vst [vmem:[%s162 + $0x2a0] sm:$0xff] %v764
        %955 = vst [vmem:[%s162 + $0x2a8] sm:$0xff] %v765
        %956 = vst [vmem:[%s162 + $0x2b0] sm:$0xff] %v766
        %957 = vst [vmem:[%s162 + $0x2b8] sm:$0xff] %v767
        %958 = vst [vmem:[%s162 + $0x2c0] sm:$0xff] %v768
        %959 = vst [vmem:[%s162 + $0x2c8] sm:$0xff] %v769
        %960 = vst.msk [vmem:[%s162 + $0x2d0] sm:$0xff] %vm875, %v770
        %961 = vst [vmem:[%s162 + $0x2d8] sm:$0xff] %v771
        %962 = vst [vmem:[%s162 + $0x2e0] sm:$0xff] %v772
        %963 = vst [vmem:[%s162 + $0x2e8] sm:$0xff] %v773
        %964 = vst [vmem:[%s162 + $0x2f0] sm:$0xff] %v774
        %965 = vst [vmem:[%s162 + $0x2f8] sm:$0xff] %v775
        %966 = vst [vmem:[%s162 + $0x300] sm:$0xff] %v776
        %967 = vst.msk [vmem:[%s162 + $0x308] sm:$0xff] %vm875, %v777
        %968 = vst [vmem:[%s162 + $0x310] sm:$0xff] %v778
        %969 = vst [vmem:[%s162 + $0x318] sm:$0xff] %v779
        %970 = vst [vmem:[%s162 + $0x320] sm:$0xff] %v780
        %971 = vst [vmem:[%s162 + $0x328] sm:$0xff] %v781
        %972 = vst [vmem:[%s162 + $0x330] sm:$0xff] %v782
        %973 = vst [vmem:[%s162 + $0x338] sm:$0xff] %v783
        %974 = vst.msk [vmem:[%s162 + $0x340] sm:$0xff] %vm875, %v784
        %975 = vst [vmem:[%s162 + $0x348] sm:$0xff] %v785
        %976 = vst [vmem:[%s162 + $0x350] sm:$0xff] %v786
        %977 = vst [vmem:[%s162 + $0x358] sm:$0xff] %v787
        %978 = vst [vmem:[%s162 + $0x360] sm:$0xff] %v788
        %979 = vst [vmem:[%s162 + $0x368] sm:$0xff] %v789
        %980 = vst [vmem:[%s162 + $0x370] sm:$0xff] %v790
        %981 = vst.msk [vmem:[%s162 + $0x378] sm:$0xff] %vm875, %v791
        %982 = vst [vmem:[%s162 + $0x380] sm:$0xff] %v792
        %983 = vst [vmem:[%s162 + $0x388] sm:$0xff] %v793
        %984 = vst [vmem:[%s162 + $0x390] sm:$0xff] %v794
        %985 = vst [vmem:[%s162 + $0x398] sm:$0xff] %v795
        %986 = vst [vmem:[%s162 + $0x3a0] sm:$0xff] %v796
        %987 = vst [vmem:[%s162 + $0x3a8] sm:$0xff] %v797
        %988 = vst.msk [vmem:[%s162 + $0x3b0] sm:$0xff] %vm875, %v798
        %989 = vst [vmem:[%s162 + $0x3b8] sm:$0xff] %v799
        %990 = vst [vmem:[%s162 + $0x3c0] sm:$0xff] %v800
        %991 = vst [vmem:[%s162 + $0x3c8] sm:$0xff] %v801
        %992 = vst [vmem:[%s162 + $0x3d0] sm:$0xff] %v802
        %993 = vst [vmem:[%s162 + $0x3d8] sm:$0xff] %v803
        %994 = vst [vmem:[%s162 + $0x3e0] sm:$0xff] %v804
        %995 = vst.msk [vmem:[%s162 + $0x3e8] sm:$0xff] %vm875, %v805
        %996 = vst [vmem:[%s162 + $0x3f0] sm:$0xff] %v806
        %997 = vst [vmem:[%s162 + $0x3f8] sm:$0xff] %v807
        %998 = vst [vmem:[%s162 + $0x400] sm:$0xff] %v808
        %999 = vst [vmem:[%s162 + $0x408] sm:$0xff] %v809
        %1000 = vst [vmem:[%s162 + $0x410] sm:$0xff] %v810
        %1001 = vst [vmem:[%s162 + $0x418] sm:$0xff] %v811
        %1002 = vst.msk [vmem:[%s162 + $0x420] sm:$0xff] %vm875, %v812
        %1003 = vst [vmem:[%s162 + $0x428] sm:$0xff] %v813
        %1004 = vst [vmem:[%s162 + $0x430] sm:$0xff] %v814
        %1005 = vst [vmem:[%s162 + $0x438] sm:$0xff] %v815
        %1006 = vst [vmem:[%s162 + $0x440] sm:$0xff] %v816
        %1007 = vst [vmem:[%s162 + $0x448] sm:$0xff] %v817
        %1008 = vst [vmem:[%s162 + $0x450] sm:$0xff] %v818
        %1009 = vst.msk [vmem:[%s162 + $0x458] sm:$0xff] %vm875, %v819
        %1010 = vst [vmem:[%s162 + $0x460] sm:$0xff] %v820
        %1011 = vst [vmem:[%s162 + $0x468] sm:$0xff] %v821
        %1012 = vst [vmem:[%s162 + $0x470] sm:$0xff] %v822
        %1013 = vst [vmem:[%s162 + $0x478] sm:$0xff] %v823
        %1014 = vst [vmem:[%s162 + $0x480] sm:$0xff] %v824
        %1015 = vst [vmem:[%s162 + $0x488] sm:$0xff] %v825
        %1016 = vst.msk [vmem:[%s162 + $0x490] sm:$0xff] %vm875, %v826
        %1017 = vst [vmem:[%s162 + $0x498] sm:$0xff] %v827
        %1018 = vst [vmem:[%s162 + $0x4a0] sm:$0xff] %v828
        %1019 = vst [vmem:[%s162 + $0x4a8] sm:$0xff] %v829
        %1020 = vst [vmem:[%s162 + $0x4b0] sm:$0xff] %v830
        %1021 = vst [vmem:[%s162 + $0x4b8] sm:$0xff] %v831
        %1022 = vst [vmem:[%s162 + $0x4c0] sm:$0xff] %v832
        %1023 = vst.msk [vmem:[%s162 + $0x4c8] sm:$0xff] %vm875, %v833
        %1024 = vst [vmem:[%s162 + $0x4d0] sm:$0xff] %v834
        %1025 = vst [vmem:[%s162 + $0x4d8] sm:$0xff] %v835
        %1026 = vst [vmem:[%s162 + $0x4e0] sm:$0xff] %v836
        %1027 = vst [vmem:[%s162 + $0x4e8] sm:$0xff] %v837
        %1028 = vst [vmem:[%s162 + $0x4f0] sm:$0xff] %v838
        %1029 = vst [vmem:[%s162 + $0x4f8] sm:$0xff] %v839
        %1030 = vst.msk [vmem:[%s162 + $0x500] sm:$0xff] %vm875, %v840
        %1031 = vst [vmem:[%s162 + $0x508] sm:$0xff] %v841
        %1032 = vst [vmem:[%s162 + $0x510] sm:$0xff] %v842
        %1033 = vst [vmem:[%s162 + $0x518] sm:$0xff] %v843
        %1034 = vst [vmem:[%s162 + $0x520] sm:$0xff] %v844
        %1035 = vst [vmem:[%s162 + $0x528] sm:$0xff] %v845
        %1036 = vst [vmem:[%s162 + $0x530] sm:$0xff] %v846
        %1037 = vst.msk [vmem:[%s162 + $0x538] sm:$0xff] %vm875, %v847
        %1038 = vst [vmem:[%s162 + $0x540] sm:$0xff] %v848
        %1039 = vst [vmem:[%s162 + $0x548] sm:$0xff] %v849
        %1040 = vst [vmem:[%s162 + $0x550] sm:$0xff] %v850
        %1041 = vst [vmem:[%s162 + $0x558] sm:$0xff] %v851
        %1042 = vst [vmem:[%s162 + $0x560] sm:$0xff] %v852
        %1043 = vst [vmem:[%s162 + $0x568] sm:$0xff] %v853
        %1044 = vst.msk [vmem:[%s162 + $0x570] sm:$0xff] %vm875, %v854
        %1045 = vst [vmem:[%s162 + $0x578] sm:$0xff] %v855
        %1046 = vst [vmem:[%s162 + $0x580] sm:$0xff] %v856
        %1047 = vst [vmem:[%s162 + $0x588] sm:$0xff] %v857
        %1048 = vst [vmem:[%s162 + $0x590] sm:$0xff] %v858
        %1049 = vst [vmem:[%s162 + $0x598] sm:$0xff] %v859
        %1050 = vst [vmem:[%s162 + $0x5a0] sm:$0xff] %v860
        %1051 = vst.msk [vmem:[%s162 + $0x5a8] sm:$0xff] %vm875, %v861
        %1052 = vst [vmem:[%s162 + $0x5b0] sm:$0xff] %v862
        %1053 = vst [vmem:[%s162 + $0x5b8] sm:$0xff] %v863
        %1054 = vst [vmem:[%s162 + $0x5c0] sm:$0xff] %v864
        %1055 = vst [vmem:[%s162 + $0x5c8] sm:$0xff] %v865
        %1056 = vst [vmem:[%s162 + $0x5d0] sm:$0xff] %v866
        %1057 = vst [vmem:[%s162 + $0x5d8] sm:$0xff] %v867
        %1058 = vst.msk [vmem:[%s162 + $0x5e0] sm:$0xff] %vm875, %v868
        %s1059 = sand.u32 %s74, 1
        %s1060 = scalar_lea.sflag [#allocation4], %s1059
        %s1061 = sand.u32 %s74, 1
        %s1062 = smul.addr %s1061, 1512
        %s1063 = scalar_lea.vmem [#allocation5], %s1062
        // Predicated region
        $region33: #{tpu_custom_call.1} parent=27 // pred_check
          %p1064 = pneg %p84
        $region34: #{tpu_custom_call.1} parent=27 // pred_check_branch
          %1066 = sbr.rel (%p1064) target = $region36
        $region35: #{tpu_custom_call.1} parent=27 // pred_region
          %s1067 = smul.u32 27, %s19
          %s1069 = ssub.s32 24192, 24192
          %1070 = vsyncadd %s1060, %s1069
          %s1071 = smul.addr %s1067, 7
          %s1072 = smul.addr %s1071, 128
          %s1073 = scalar_lea.hbm %s2, %s1072
          %s1074 = sshll.u32 %s1063, 4
          %s1075 = int_to_ptr.vmem [resolvable:$true] %s1074
          %1080 = dma.vmem_to_hbm [thread:$0]  %s1075, 24192, %s1073, %s1060, 896, 896, 56
        $region36: #{tpu_custom_call.1} parent=27 // pred_fallthru
          _
      $region28: #{tpu_custom_call.1} parent=5 // pred_fallthru
        _
      %p1081 = scmp.le.s32.totalorder 2, %s14
      // Predicated region
      $region37: #{tpu_custom_call.1} parent=5 // pred_check
        %p1082 = pneg %p1081
      $region38: #{tpu_custom_call.1} parent=5 // pred_check_branch
        %1084 = sbr.rel (%p1082) target = $region40
      $region39: #{tpu_custom_call.1} parent=5 // pred_region
        %s1085 = ssub.s32 %s14, 2
        // Predicated region
        $region41: #{tpu_custom_call.1} parent=39 // pred_check
          %p1086 = pneg %p90
        $region42: #{tpu_custom_call.1} parent=39 // pred_check_branch
          %1088 = sbr.rel (%p1086) target = $region44
        $region43: #{tpu_custom_call.1} parent=39 // pred_region
          %s1089 = sand.u32 %s75, 1
          %s1090 = scalar_lea.sflag [#allocation4], %s1089
          %s1091 = sand.u32 %s75, 1
          %s1092 = smul.addr %s1091, 1512
          %s1093 = scalar_lea.vmem [#allocation5], %s1092
          %1094 = dma.done %s1090, 24192
        $region44: #{tpu_custom_call.1} parent=39 // pred_fallthru
          _
      $region40: #{tpu_custom_call.1} parent=5 // pred_fallthru
        _
    $region6: #{tpu_custom_call.1} parent=1 // loop_footer
      %s18 = sadd.s32 1, %s14
    $region7: #{tpu_custom_call.1} parent=1 // loop_footer_branch
      %13 = sbr.rel target = $region3
    $region8: #{tpu_custom_call.1} parent=1 // loop_exit
      _
    %1095 = vsyncpa [#allocation3], 1
    %s1096 = scalar_lea.sflag [#allocation3], 1
    %1097 = vsyncpa %s1096, 1
    %1098 = vsyncpa [#allocation4], 1
    %s1099 = scalar_lea.sflag [#allocation4], 1
    %1100 = vsyncpa %s1099, 1

</llo_original>
